<compile_context>
chip_gen: v6e
topology: v6e:2x2x1
jax: 0.10.0
libtpu: 0.0.40
codegen_flags: <defaults>
</compile_context>

<pallas_src>
import math

import jax
import jax.numpy as jnp
from jax.experimental import pallas as pl
from jax.experimental.pallas import tpu as pltpu

EPS = 1e-5
# Per-grid-step byte budget for the streamed blocks (input bands + conv out).
# Keeps steps big enough to amortize the ~0.35us/step overhead while staying
# far below the scoped VMEM limits (16 MiB v5e / 32 MiB v6e/v7x defaults).
TARGET_BLOCK_BYTES = 4 * 1024 * 1024


def _round_up(x, m):
    return (x + m - 1) // m * m


# ---------------------------------------------------------------------------
# Pass 1: 3x3 conv (channel-major, shift-and-mask horizontal combine) +
#         per-tile partial BN statistics from the f32 accumulator.
# ---------------------------------------------------------------------------
def _make_conv_stats_kernel(W, Cout, tile):
    def kernel(x_ref, w_ref, conv_ref, stats_ref):
        # x_ref    : (3*Cin, tile) bf16  rows = (dy, ci), cols = pixels (n,h,w)-major
        # w_ref    : (3, Cout, 3*Cin) bf16  [dx] -> left / center / right column taps
        # conv_ref : (Cout, tile) bf16   conv output tile (lane-dense)
        # stats_ref: (1, Cout, 2) f32    per-tile [sum, sum-of-squares]
        x = x_ref[...]
        # Vertical (dy) + channel contraction for each horizontal tap position.
        c_l = jnp.dot(w_ref[0], x, preferred_element_type=jnp.float32)
        c_c = jnp.dot(w_ref[1], x, preferred_element_type=jnp.float32)
        c_r = jnp.dot(w_ref[2], x, preferred_element_type=jnp.float32)

        # Horizontal combine:
        #   out[:, p] = c_c[:, p] + c_l[:, p-1]*[w>0] + c_r[:, p+1]*[w<W-1]
        # tile % W == 0, so the local column index mod W is the true w position
        # and the image-edge masks also cover the tile-edge shift fills.
        zcol = jnp.zeros((Cout, 1), jnp.float32)
        lsh = jnp.concatenate([zcol, c_l[:, : tile - 1]], axis=1)
        rsh = jnp.concatenate([c_r[:, 1:], zcol], axis=1)
        wpos = jax.lax.broadcasted_iota(jnp.int32, (1, tile), 1) % W
        acc = (c_c
               + jnp.where(wpos != 0, lsh, 0.0)
               + jnp.where(wpos != W - 1, rsh, 0.0))

        # bf16 storage of the conv intermediate (halves its HBM round trip);
        # BN statistics come from the f32 accumulator.
        conv_ref[...] = acc.astype(conv_ref.dtype)
        s = jnp.sum(acc, axis=1, keepdims=True)           # (Cout, 1)
        sq = jnp.sum(acc * acc, axis=1, keepdims=True)    # (Cout, 1)
        stats_ref[...] = jnp.concatenate([s, sq], axis=1)[None]  # one full-block store

    return kernel


# ---------------------------------------------------------------------------
# Pass 2: folded BN affine  y = conv * scale + shift  (per output channel).
# ---------------------------------------------------------------------------
def bn_apply_kernel(conv_ref, scale_ref, shift_ref, out_ref):
    out_ref[...] = (conv_ref[...].astype(jnp.float32) * scale_ref[...]
                    + shift_ref[...])


def conv_block(x_nchw, w_oihw, bias, gamma, beta):
    """Forward pass of ConvBlock. x_nchw: (N, Cin, H, W) float32."""
    N, Cin, H, W = x_nchw.shape
    Cout = w_oihw.shape[0]
    rows = N * H * W

    # --- tile selection: lane-dense (multiple of 128), multiple of W (so the
    #     in-kernel w-position mask is a static iota), and divides rows_p.
    unit = W * 128 // math.gcd(W, 128)
    bytes_per_col = (3 * Cin + Cout) * 2  # bf16 bands in + bf16 conv out per column
    target = max(unit, (TARGET_BLOCK_BYTES // bytes_per_col) // unit * unit)
    tile = min(_round_up(rows, unit), target)
    rows_p = _round_up(rows, tile)
    num_tiles = rows_p // tile
    # TODO(synk): for very large Cin/Cout on v7x (64 MiB VMEM/TC), add a K grid
    # axis marked "arbitrary" with an f32 VMEM accumulator and single-buffer the
    # resident weight block (pipeline_mode=pl.Buffered(1)).

    # --- plain-JAX glue (O(x) bytes): channel-major bands + weight repack -----
    # TODO(synk): in a full network keep activations channel-major (C, N*H*W)
    # end-to-end so this layout change (and the final one) happens once, not
    # per ConvBlock.
    xc = jnp.transpose(x_nchw, (1, 0, 2, 3)).astype(jnp.bfloat16)   # (Cin,N,H,W)
    xp = jnp.pad(xc, ((0, 0), (0, 0), (1, 1), (0, 0)))              # pad H only
    bands = [xp[:, :, dy:dy + H, :].reshape(Cin, rows) for dy in range(3)]
    xb = jnp.concatenate(bands, axis=0)                             # (3*Cin, rows)
    xb = jnp.pad(xb, ((0, 0), (0, rows_p - rows)))                  # zero pixel cols

    # (Cout, Cin, 3, 3) -> (dx, Cout, dy*Cin + ci) to match the band stacking.
    wp = jnp.transpose(w_oihw, (3, 0, 2, 1)).reshape(3, Cout, 3 * Cin)
    wp = wp.astype(jnp.bfloat16)

    # Conv bias is dropped: training-mode BN mean subtraction cancels it exactly
    # (note: the mean below therefore excludes the bias; re-add it if running
    # stats are ever exported).
    del bias

    # --- pass 1: conv + partial stats over a parallel pixel-tile grid ---------
    conv, part = pl.pallas_call(
        _make_conv_stats_kernel(W, Cout, tile),
        out_shape=(jax.ShapeDtypeStruct((Cout, rows_p), jnp.bfloat16),
                   jax.ShapeDtypeStruct((num_tiles, Cout, 2), jnp.float32)),
        grid=(num_tiles,),
        in_specs=[pl.BlockSpec((3 * Cin, tile), lambda i: (0, i)),
                  pl.BlockSpec((3, Cout, 3 * Cin), lambda i: (0, 0, 0))],
        out_specs=(pl.BlockSpec((Cout, tile), lambda i: (0, i)),
                   pl.BlockSpec((1, Cout, 2), lambda i: (i, 0, 0))),
        compiler_params=pltpu.CompilerParams(
            dimension_semantics=("parallel",),
            vmem_limit_bytes=32 * 1024 * 1024),
    )(xb, wp)

    # --- tiny O(Cout) finalize of the batch statistics (plain JAX) ------------
    # (E[x^2]-E[x]^2 in f32; fine for zero-mean activations.  For very large
    #  rows / strongly biased activations switch to Chan's shifted combine.)
    sums = jnp.sum(part[:, :, 0], axis=0)
    sumsq = jnp.sum(part[:, :, 1], axis=0)
    mean = sums / rows                          # padded columns contribute zero
    var = sumsq / rows - mean * mean            # biased variance (PyTorch BN)
    inv_std = jax.lax.rsqrt(var + EPS)
    g = gamma.astype(jnp.float32)
    scale = (g * inv_std)[:, None]                                   # (Cout, 1)
    shift = (beta.astype(jnp.float32) - mean * g * inv_std)[:, None]  # (Cout, 1)

    # --- pass 2: lane-dense folded-affine normalize ---------------------------
    out2d = pl.pallas_call(
        bn_apply_kernel,
        out_shape=jax.ShapeDtypeStruct((Cout, rows_p), jnp.float32),
        grid=(num_tiles,),
        in_specs=[pl.BlockSpec((Cout, tile), lambda i: (0, i)),
                  pl.BlockSpec((Cout, 1), lambda i: (0, 0)),
                  pl.BlockSpec((Cout, 1), lambda i: (0, 0))],
        out_specs=pl.BlockSpec((Cout, tile), lambda i: (0, i)),
        compiler_params=pltpu.CompilerParams(
            dimension_semantics=("parallel",),
            vmem_limit_bytes=32 * 1024 * 1024),
    )(conv, scale, shift)

    out = out2d[:, :rows].reshape(Cout, N, H, W)
    return jnp.transpose(out, (1, 0, 2, 3))     # back to NCHW (module contract)


def reference(x_nchw, w_oihw, bias, gamma, beta):
    """Pure-JAX reference matching PyTorch semantics (conv + train-mode BN)."""
    y = jax.lax.conv_general_dilated(
        x_nchw, w_oihw, window_strides=(1, 1), padding=((1, 1), (1, 1)),
        dimension_numbers=("NCHW", "OIHW", "NCHW"))
    y = y + bias[None, :, None, None]
    mean = jnp.mean(y, axis=(0, 2, 3), keepdims=True)
    var = jnp.mean((y - mean) ** 2, axis=(0, 2, 3), keepdims=True)  # biased
    y = (y - mean) * jax.lax.rsqrt(var + EPS)
    return y * gamma[None, :, None, None] + beta[None, :, None, None]


if __name__ == "__main__":
    N, Cin, Cout, H, W = 2, 4, 8, 16, 16

    key = jax.random.PRNGKey(0)
    kx, kw, kb, kg, kbt = jax.random.split(key, 5)

    x = jax.random.normal(kx, (N, Cin, H, W), dtype=jnp.float32)
    w = jax.random.normal(kw, (Cout, Cin, 3, 3), dtype=jnp.float32) * 0.1
    b = jax.random.normal(kb, (Cout,), dtype=jnp.float32) * 0.1
    gamma = 1.0 + 0.1 * jax.random.normal(kg, (Cout,), dtype=jnp.float32)
    beta = 0.1 * jax.random.normal(kbt, (Cout,), dtype=jnp.float32)

    out = jax.block_until_ready(conv_block(x, w, b, gamma, beta))
    ref = jax.block_until_ready(reference(x, w, b, gamma, beta))

    assert out.shape == (N, Cout, H, W), out.shape
    # bf16 MXU operands + bf16 conv-intermediate storage (f32 accumulation and
    # f32 BN statistics) -> tolerance loosened vs the pure-f32 reference.
    assert jnp.allclose(out, ref, atol=2e-2, rtol=2e-2), (
        float(jnp.max(jnp.abs(out - ref))))

    print("KERNEL_OK")
</pallas_src>

<mosaic_0001>
module attributes {stable_mosaic.version = 11 : i64} {
  func.func @kernel(%arg0: i32, %arg1: memref<12x512xbf16, #tpu.memory_space<vmem>>, %arg2: memref<3x8x12xbf16, #tpu.memory_space<vmem>>, %arg3: memref<8x512xbf16, #tpu.memory_space<vmem>>, %arg4: memref<1x8x2xf32, #tpu.memory_space<vmem>>) attributes {dimension_semantics = [#tpu.dimension_semantics<parallel>], iteration_bounds = array<i64: 1>, scalar_prefetch = 0 : i64, scratch_operands = 0 : i64, tpu.core_type = #tpu.core_type<tc>, window_params = [{transform_indices = @transform_0, window_bounds = array<i64: 12, 512>}, {pipeline_mode = #tpu.pipeline_mode<synchronous>, transform_indices = @transform_1, window_bounds = array<i64: 3, 8, 12>}, {transform_indices = @transform_2, window_bounds = array<i64: 8, 512>}, {transform_indices = @transform_3, window_bounds = array<i64: 1, 8, 2>}]} {
    %c0 = arith.constant 0 : index
    %c0_0 = arith.constant 0 : index
    %0 = vector.load %arg1[%c0, %c0_0] : memref<12x512xbf16, #tpu.memory_space<vmem>>, vector<12x512xbf16>
    %c0_1 = arith.constant 0 : index
    %c0_2 = arith.constant 0 : index
    %c0_3 = arith.constant 0 : index
    %1 = vector.load %arg2[%c0_1, %c0_2, %c0_3] : memref<3x8x12xbf16, #tpu.memory_space<vmem>>, vector<1x8x12xbf16>
    %2 = vector.shape_cast %1 : vector<1x8x12xbf16> to vector<8x12xbf16>
    %cst = arith.constant dense<0.000000e+00> : vector<8x512xf32>
    %3 = tpu.matmul %2, %0, %cst {dimension_numbers = #tpu.dot_dimension_numbers<[1], [0], [0], [1], [0, 0, 1, 1], [], []>} : vector<8x12xbf16>, vector<12x512xbf16>, vector<8x512xf32> -> vector<8x512xf32>
    %c1 = arith.constant 1 : index
    %c0_4 = arith.constant 0 : index
    %c0_5 = arith.constant 0 : index
    %4 = vector.load %arg2[%c1, %c0_4, %c0_5] : memref<3x8x12xbf16, #tpu.memory_space<vmem>>, vector<1x8x12xbf16>
    %5 = vector.shape_cast %4 : vector<1x8x12xbf16> to vector<8x12xbf16>
    %cst_6 = arith.constant dense<0.000000e+00> : vector<8x512xf32>
    %6 = tpu.matmul %5, %0, %cst_6 {dimension_numbers = #tpu.dot_dimension_numbers<[1], [0], [0], [1], [0, 0, 1, 1], [], []>} : vector<8x12xbf16>, vector<12x512xbf16>, vector<8x512xf32> -> vector<8x512xf32>
    %c2 = arith.constant 2 : index
    %c0_7 = arith.constant 0 : index
    %c0_8 = arith.constant 0 : index
    %7 = vector.load %arg2[%c2, %c0_7, %c0_8] : memref<3x8x12xbf16, #tpu.memory_space<vmem>>, vector<1x8x12xbf16>
    %8 = vector.shape_cast %7 : vector<1x8x12xbf16> to vector<8x12xbf16>
    %cst_9 = arith.constant dense<0.000000e+00> : vector<8x512xf32>
    %9 = tpu.matmul %8, %0, %cst_9 {dimension_numbers = #tpu.dot_dimension_numbers<[1], [0], [0], [1], [0, 0, 1, 1], [], []>} : vector<8x12xbf16>, vector<12x512xbf16>, vector<8x512xf32> -> vector<8x512xf32>
    %cst_10 = arith.constant 0.000000e+00 : f32
    %10 = vector.broadcast %cst_10 : f32 to vector<8x1xf32>
    %11 = vector.extract_strided_slice %3 {offsets = [0, 0], sizes = [8, 511], strides = [1, 1]} : vector<8x512xf32> to vector<8x511xf32>
    %12 = tpu.concatenate %10, %11 in 1 : vector<8x1xf32>, vector<8x511xf32> -> vector<8x512xf32>
    %13 = vector.extract_strided_slice %9 {offsets = [0, 1], sizes = [8, 511], strides = [1, 1]} : vector<8x512xf32> to vector<8x511xf32>
    %14 = tpu.concatenate %13, %10 in 1 : vector<8x511xf32>, vector<8x1xf32> -> vector<8x512xf32>
    %15 = tpu.iota {dimensions = array<i32: 1>} : vector<1x512xi32>
    %c16_i32 = arith.constant 16 : i32
    %c0_i32 = arith.constant 0 : i32
    %16 = arith.cmpi eq, %c16_i32, %c0_i32 : i32
    %c1_i32 = arith.constant 1 : i32
    %17 = arith.select %16, %c1_i32, %c16_i32 : i32
    %18 = vector.broadcast %17 : i32 to vector<1x512xi32>
    %19 = arith.remsi %15, %18 : vector<1x512xi32>
    %c0_i32_11 = arith.constant 0 : i32
    %20 = vector.broadcast %c0_i32_11 : i32 to vector<1x512xi32>
    %21 = arith.cmpi ne, %19, %20 : vector<1x512xi32>
    %c0_i32_12 = arith.constant 0 : i32
    %22 = vector.broadcast %c0_i32_12 : i32 to vector<1x512xi32>
    %23 = arith.cmpi slt, %19, %22 : vector<1x512xi32>
    %c0_i32_13 = arith.constant 0 : i32
    %24 = arith.cmpi slt, %17, %c0_i32_13 : i32
    %25 = vector.broadcast %24 : i1 to vector<1x512xi1>
    %26 = vector.broadcast %25 : vector<1x512xi1> to vector<1x512xi1>
    %27 = arith.xori %23, %26 : vector<1x512xi1>
    %28 = arith.andi %27, %21 : vector<1x512xi1>
    %29 = vector.broadcast %17 : i32 to vector<1x512xi32>
    %30 = arith.addi %19, %29 : vector<1x512xi32>
    %31 = arith.select %28, %30, %19 : vector<1x512xi1>, vector<1x512xi32>
    %c0_i32_14 = arith.constant 0 : i32
    %32 = vector.broadcast %c0_i32_14 : i32 to vector<1x512xi32>
    %33 = arith.cmpi ne, %31, %32 : vector<1x512xi32>
    %cst_15 = arith.constant 0.000000e+00 : f32
    %34 = vector.shape_cast %33 : vector<1x512xi1> to vector<1x512xi1>
    %35 = vector.broadcast %34 : vector<1x512xi1> to vector<8x512xi1>
    %36 = vector.broadcast %cst_15 : f32 to vector<8x512xf32>
    %37 = arith.select %35, %12, %36 : vector<8x512xi1>, vector<8x512xf32>
    %38 = arith.addf %6, %37 : vector<8x512xf32>
    %c15_i32 = arith.constant 15 : i32
    %39 = vector.broadcast %c15_i32 : i32 to vector<1x512xi32>
    %40 = arith.cmpi ne, %31, %39 : vector<1x512xi32>
    %cst_16 = arith.constant 0.000000e+00 : f32
    %41 = vector.shape_cast %40 : vector<1x512xi1> to vector<1x512xi1>
    %42 = vector.broadcast %41 : vector<1x512xi1> to vector<8x512xi1>
    %43 = vector.broadcast %cst_16 : f32 to vector<8x512xf32>
    %44 = arith.select %42, %14, %43 : vector<8x512xi1>, vector<8x512xf32>
    %45 = arith.addf %38, %44 : vector<8x512xf32>
    %46 = arith.truncf %45 : vector<8x512xf32> to vector<8x512xbf16>
    %c0_17 = arith.constant 0 : index
    %c0_18 = arith.constant 0 : index
    %47 = vector.load %arg3[%c0_17, %c0_18] : memref<8x512xbf16, #tpu.memory_space<vmem>>, vector<8x512xbf16>
    tpu.vector_store %arg3[%c0_17, %c0_18], %46 {strides = array<i32>} : memref<8x512xbf16, #tpu.memory_space<vmem>>, vector<8x512xbf16>,
    %cst_19 = arith.constant dense<0.000000e+00> : vector<8xf32>
    %48 = vector.multi_reduction <add>, %45, %cst_19 [1] : vector<8x512xf32> to vector<8xf32>
    %49 = vector.shape_cast %48 : vector<8xf32> to vector<8x1xf32>
    %50 = arith.mulf %45, %45 : vector<8x512xf32>
    %cst_20 = arith.constant dense<0.000000e+00> : vector<8xf32>
    %51 = vector.multi_reduction <add>, %50, %cst_20 [1] : vector<8x512xf32> to vector<8xf32>
    %52 = vector.shape_cast %51 : vector<8xf32> to vector<8x1xf32>
    %53 = tpu.concatenate %49, %52 in 1 : vector<8x1xf32>, vector<8x1xf32> -> vector<8x2xf32>
    %54 = vector.shape_cast %53 : vector<8x2xf32> to vector<1x8x2xf32>
    %c0_21 = arith.constant 0 : index
    %c0_22 = arith.constant 0 : index
    %c0_23 = arith.constant 0 : index
    %55 = vector.load %arg4[%c0_21, %c0_22, %c0_23] : memref<1x8x2xf32, #tpu.memory_space<vmem>>, vector<1x8x2xf32>
    tpu.vector_store %arg4[%c0_21, %c0_22, %c0_23], %54 {strides = array<i32>} : memref<1x8x2xf32, #tpu.memory_space<vmem>>, vector<1x8x2xf32>,
    return
  }
  func.func @transform_0(%arg0: i32) -> (i32, i32) {
    %c0_i32 = arith.constant 0 : i32
    %c0_i32_0 = arith.constant 0 : i32
    return %c0_i32, %arg0 : i32, i32
  }
  func.func @transform_1(%arg0: i32) -> (i32, i32, i32) {
    %c0_i32 = arith.constant 0 : i32
    %c0_i32_0 = arith.constant 0 : i32
    %c0_i32_1 = arith.constant 0 : i32
    %c0_i32_2 = arith.constant 0 : i32
    return %c0_i32, %c0_i32_0, %c0_i32_1 : i32, i32, i32
  }
  func.func @transform_2(%arg0: i32) -> (i32, i32) {
    %c0_i32 = arith.constant 0 : i32
    %c0_i32_0 = arith.constant 0 : i32
    return %c0_i32, %arg0 : i32, i32
  }
  func.func @transform_3(%arg0: i32) -> (i32, i32, i32) {
    %c0_i32 = arith.constant 0 : i32
    %c0_i32_0 = arith.constant 0 : i32
    %c0_i32_1 = arith.constant 0 : i32
    return %arg0, %c0_i32, %c0_i32_0 : i32, i32, i32
  }
}

</mosaic_0001>

<llo_original>
// kernel: tpu_custom_call.1
$region0: #{tpu_custom_call.1}
  #allocation0 [shape = 'u32[]', space=smem, size = 0x4, offset = 0x4, fixed_abs, tag = 'smem constant byte address 0x4 - core index']
  #allocation1 [shape = 'u32[144,128]{1,0:T(1,128)}', space=vmem, size = 0x12000, scoped, tag = 'internal scratch']
  %s0 = inlined_call_operand.hbm [shape: bf16[12,512], index: 0, kind: input, shape index: {}]
  %s1 = inlined_call_operand.hbm [shape: bf16[3,8,12], index: 1, kind: input, shape index: {}]
  %s2 = inlined_call_operand.hbm [shape: bf16[8,512], index: 2, kind: output, shape index: {0}]
  %s3 = inlined_call_operand.vmem [shape: f32[1,8,2], index: 3, kind: output, shape index: {1}]
  %4 = xla_tuple %s2, %s3
  %s5 = sld [smem:[#allocation0]]
  $region34: #{tpu_custom_call.1} parent=0
    _
  %s7 = ssub.s32 1, %s5
  %s8 = scalar_select 0, %s7, %s5
  $region1: #{tpu_custom_call.1} parent=0
    #allocation2 [shape = 'u8[16384]{0}', space=vmem, size = 0x4000, scoped, tag = 'input window, operand 0, single buffered']
    #allocation3 [shape = 's32[1]{0}', space=sflag, size = 0x4, scoped, tag = 'scoped memory for tpu_custom_call.1']
    #allocation4 [shape = 's32[1]{0}', space=sflag, size = 0x4, scoped, tag = 'scoped memory for tpu_custom_call.1']
    #allocation5 [shape = 'u8[6144]{0}', space=vmem, size = 0x1800, scoped, tag = 'input window, operand 1, single buffered']
    #allocation6 [shape = 's32[1]{0}', space=sflag, size = 0x4, scoped, tag = 'scoped memory for tpu_custom_call.1']
    #allocation7 [shape = 'u8[8192]{0}', space=vmem, size = 0x2000, scoped, tag = 'output window, operand 0, single buffered']
    %9 = vsyncpa [#allocation3], 0
    %10 = vsyncpa [#allocation6], 0
    %11 = vsyncpa [#allocation4], 0
    // Predicated region
    $region2: #{tpu_custom_call.1} parent=1 // pred_check
      _
    $region3: #{tpu_custom_call.1} parent=1 // pred_check_branch
      %13 = sbr.rel (0) target = $region5
    $region4: #{tpu_custom_call.1} parent=1 // pred_region
      %s15 = ssub.s32 512, 512
      %16 = vsyncadd [#allocation3], %s15
      %s17 = sshll.u32 [#allocation2], 4
      %s18 = int_to_ptr.vmem [resolvable:$true] %s17
      %23 = dma.hbm_to_vmem [thread:$0]  %s0, 512, %s18, [#allocation3], 256, 256, 16
    $region5: #{tpu_custom_call.1} parent=1 // pred_fallthru
      _
    // Predicated region
    $region6: #{tpu_custom_call.1} parent=1 // pred_check
      _
    $region7: #{tpu_custom_call.1} parent=1 // pred_check_branch
      %25 = sbr.rel (0) target = $region9
    $region8: #{tpu_custom_call.1} parent=1 // pred_region
      %s27 = ssub.s32 192, 192
      %28 = vsyncadd [#allocation6], %s27
      %s29 = sshll.u32 [#allocation5], 4
      %s30 = int_to_ptr.vmem [resolvable:$true] %s29
      %35 = dma.hbm_to_vmem [thread:$0]  %s1, 192, %s30, [#allocation6], 64, 64, 4
    $region9: #{tpu_custom_call.1} parent=1 // pred_fallthru
      _
    // Predicated region
    $region10: #{tpu_custom_call.1} parent=1 // pred_check
      _
    $region11: #{tpu_custom_call.1} parent=1 // pred_check_branch
      %37 = sbr.rel (0) target = $region13
    $region12: #{tpu_custom_call.1} parent=1 // pred_region
      %38 = dma.done [#allocation3], 512
    $region13: #{tpu_custom_call.1} parent=1 // pred_fallthru
      _
    // Predicated region
    $region14: #{tpu_custom_call.1} parent=1 // pred_check
      _
    $region15: #{tpu_custom_call.1} parent=1 // pred_check_branch
      %40 = sbr.rel (0) target = $region17
    $region16: #{tpu_custom_call.1} parent=1 // pred_region
      %41 = dma.done [#allocation6], 192
    $region17: #{tpu_custom_call.1} parent=1 // pred_fallthru
      _
    %v43 = vld [vmem:[#allocation2] sm:$0xff]
    %v44 = vld [vmem:[#allocation2 + $0x8] sm:$0xff]
    %v45 = vld [vmem:[#allocation2 + $0x10] sm:$0x33]
    %v46 = vld [vmem:[#allocation2 + $0x18] sm:$0x33]
    %v47 = vld [vmem:[#allocation5] sm:$0xf]
    %v52 = vunpack.c.l.b16 %v43
    %v53 = vunpack.c.h.b16 %v43
    %v54 = vunpack.c.l.b16 %v44
    %v55 = vunpack.c.h.b16 %v44
    %v56 = vunpack.c.l.b16 %v45
    %v57 = vunpack.c.h.b16 %v45
    %v58 = vunpack.c.l.b16 %v46
    %v59 = vunpack.c.h.b16 %v46
    %v60 = vpack.c.b16 %v56, %v52
    %v61 = vpack.c.b16 %v57, %v53
    %v62 = vpack.c.b16 %v58, %v54
    %v63 = vpack.c.b16 %v59, %v55
    %vm64 = vcmask 97280
    %v66 = vsel %vm64, %v47, 0
    %vm68 = vcmask 1045504
    %v70 = vsel %vm68, %v60, 0
    %v73 = vsel %vm68, %v61, 0
    %v76 = vsel %vm68, %v62, 0
    %v79 = vsel %vm68, %v63, 0
    %81 = vmatprep.subr.bf16.mxu0 0
    %82 = vmatpush1.bf16.msra.mxu0 0
    %83 = vmatprep.subr.bf16.mxu0 0
    %84 = vmatpush1.bf16.msra.mxu0 0
    %85 = vmatprep.subr.bf16.mxu0 0
    %86 = vmatpush1.bf16.msra.mxu0 0
    %87 = vmatprep.subr.bf16.mxu0 0
    %88 = vmatpush1.bf16.msra.mxu0 0
    %89 = vmatprep.subr.bf16.mxu0 0
    %90 = vmatpush1.bf16.msra.mxu0 0
    %91 = vmatprep.subr.bf16.mxu0 0
    %92 = vmatpush1.bf16.msra.mxu0 0
    %93 = vmatprep.subr.bf16.mxu0 0
    %94 = vmatpush1.bf16.msra.mxu0 0
    %95 = vmatprep.subr.bf16.mxu0 %v73
    %96 = vmatpush1.bf16.msra.mxu0 %v70
    %97 = vmatprep.subr.bf16.mxu0 0
    %98 = vmatpush2.bf16.msra.mxu0 0
    %99 = vmatprep.subr.bf16.mxu0 0
    %100 = vmatpush2.bf16.msra.mxu0 0
    %101 = vmatprep.subr.bf16.mxu0 0
    %102 = vmatpush2.bf16.msra.mxu0 0
    %103 = vmatprep.subr.bf16.mxu0 0
    %104 = vmatpush2.bf16.msra.mxu0 0
    %105 = vmatprep.subr.bf16.mxu0 0
    %106 = vmatpush2.bf16.msra.mxu0 0
    %107 = vmatprep.subr.bf16.mxu0 0
    %108 = vmatpush2.bf16.msra.mxu0 0
    %109 = vmatprep.subr.bf16.mxu0 0
    %110 = vmatpush2.bf16.msra.mxu0 0
    %111 = vmatprep.subr.bf16.mxu0 0
    %112 = vmatpush2.bf16.msra.mxu0 0
    %113 = vmatprep.mubr.bf16.mxu0 0
    %114 = vmatmul.mubr.bf16.gmra.mxu0 %v66
    %v115 = vpop.f32.mrf.mxu0
    %v116 = vadd.f32 0.0, %v115
    %v117 = vpop.f32.mrf.mxu0
    %v118 = vadd.f32 0.0, %v117
    %v119 = vpop.f32.mrf.mxu0
    %v120 = vpop.f32.mrf.mxu0
    %121 = vdwg.mxu0
    %122 = vmatprep.subr.bf16.mxu0 0
    %123 = vmatpush1.bf16.msra.mxu0 0
    %124 = vmatprep.subr.bf16.mxu0 0
    %125 = vmatpush1.bf16.msra.mxu0 0
    %126 = vmatprep.subr.bf16.mxu0 0
    %127 = vmatpush1.bf16.msra.mxu0 0
    %128 = vmatprep.subr.bf16.mxu0 0
    %129 = vmatpush1.bf16.msra.mxu0 0
    %130 = vmatprep.subr.bf16.mxu0 0
    %131 = vmatpush1.bf16.msra.mxu0 0
    %132 = vmatprep.subr.bf16.mxu0 0
    %133 = vmatpush1.bf16.msra.mxu0 0
    %134 = vmatprep.subr.bf16.mxu0 0
    %135 = vmatpush1.bf16.msra.mxu0 0
    %136 = vmatprep.subr.bf16.mxu0 %v79
    %137 = vmatpush1.bf16.msra.mxu0 %v76
    %138 = vmatprep.subr.bf16.mxu0 0
    %139 = vmatpush2.bf16.msra.mxu0 0
    %140 = vmatprep.subr.bf16.mxu0 0
    %141 = vmatpush2.bf16.msra.mxu0 0
    %142 = vmatprep.subr.bf16.mxu0 0
    %143 = vmatpush2.bf16.msra.mxu0 0
    %144 = vmatprep.subr.bf16.mxu0 0
    %145 = vmatpush2.bf16.msra.mxu0 0
    %146 = vmatprep.subr.bf16.mxu0 0
    %147 = vmatpush2.bf16.msra.mxu0 0
    %148 = vmatprep.subr.bf16.mxu0 0
    %149 = vmatpush2.bf16.msra.mxu0 0
    %150 = vmatprep.subr.bf16.mxu0 0
    %151 = vmatpush2.bf16.msra.mxu0 0
    %152 = vmatprep.subr.bf16.mxu0 0
    %153 = vmatpush2.bf16.msra.mxu0 0
    %154 = vmatprep.mubr.bf16.mxu0 0
    %155 = vmatmul.mubr.bf16.gmra.mxu0 %v66
    %v156 = vpop.f32.mrf.mxu0
    %v157 = vadd.f32 0.0, %v156
    %v158 = vpop.f32.mrf.mxu0
    %v159 = vadd.f32 0.0, %v158
    %v160 = vpop.f32.mrf.mxu0
    %v161 = vpop.f32.mrf.mxu0
    %162 = vdwg.mxu0
    %s163 = scalar_lea.vmem [#allocation5], 4
    %v164 = vld [vmem:[%s163] sm:$0xf]
    %s165 = scalar_lea.vmem [#allocation5], 8
    %v166 = vld [vmem:[%s165] sm:$0xf]
    %v168 = vsel %vm64, %v166, 0
    %170 = vmatprep.subr.bf16.mxu0 0
    %171 = vmatpush1.bf16.msra.mxu0 0
    %172 = vmatprep.subr.bf16.mxu0 0
    %173 = vmatpush1.bf16.msra.mxu0 0
    %174 = vmatprep.subr.bf16.mxu0 0
    %175 = vmatpush1.bf16.msra.mxu0 0
    %176 = vmatprep.subr.bf16.mxu0 0
    %177 = vmatpush1.bf16.msra.mxu0 0
    %178 = vmatprep.subr.bf16.mxu0 0
    %179 = vmatpush1.bf16.msra.mxu0 0
    %180 = vmatprep.subr.bf16.mxu0 0
    %181 = vmatpush1.bf16.msra.mxu0 0
    %182 = vmatprep.subr.bf16.mxu0 0
    %183 = vmatpush1.bf16.msra.mxu0 0
    %184 = vmatprep.subr.bf16.mxu0 %v73
    %185 = vmatpush1.bf16.msra.mxu0 %v70
    %186 = vmatprep.subr.bf16.mxu0 0
    %187 = vmatpush2.bf16.msra.mxu0 0
    %188 = vmatprep.subr.bf16.mxu0 0
    %189 = vmatpush2.bf16.msra.mxu0 0
    %190 = vmatprep.subr.bf16.mxu0 0
    %191 = vmatpush2.bf16.msra.mxu0 0
    %192 = vmatprep.subr.bf16.mxu0 0
    %193 = vmatpush2.bf16.msra.mxu0 0
    %194 = vmatprep.subr.bf16.mxu0 0
    %195 = vmatpush2.bf16.msra.mxu0 0
    %196 = vmatprep.subr.bf16.mxu0 0
    %197 = vmatpush2.bf16.msra.mxu0 0
    %198 = vmatprep.subr.bf16.mxu0 0
    %199 = vmatpush2.bf16.msra.mxu0 0
    %200 = vmatprep.subr.bf16.mxu0 0
    %201 = vmatpush2.bf16.msra.mxu0 0
    %202 = vmatprep.mubr.bf16.mxu0 0
    %203 = vmatmul.mubr.bf16.gmra.mxu0 %v168
    %v204 = vpop.f32.mrf.mxu0
    %v205 = vadd.f32 0.0, %v204
    %v206 = vpop.f32.mrf.mxu0
    %v207 = vadd.f32 0.0, %v206
    %v208 = vpop.f32.mrf.mxu0
    %v209 = vpop.f32.mrf.mxu0
    %210 = vdwg.mxu0
    %211 = vmatprep.subr.bf16.mxu0 0
    %212 = vmatpush1.bf16.msra.mxu0 0
    %213 = vmatprep.subr.bf16.mxu0 0
    %214 = vmatpush1.bf16.msra.mxu0 0
    %215 = vmatprep.subr.bf16.mxu0 0
    %216 = vmatpush1.bf16.msra.mxu0 0
    %217 = vmatprep.subr.bf16.mxu0 0
    %218 = vmatpush1.bf16.msra.mxu0 0
    %219 = vmatprep.subr.bf16.mxu0 0
    %220 = vmatpush1.bf16.msra.mxu0 0
    %221 = vmatprep.subr.bf16.mxu0 0
    %222 = vmatpush1.bf16.msra.mxu0 0
    %223 = vmatprep.subr.bf16.mxu0 0
    %224 = vmatpush1.bf16.msra.mxu0 0
    %225 = vmatprep.subr.bf16.mxu0 %v79
    %226 = vmatpush1.bf16.msra.mxu0 %v76
    %227 = vmatprep.subr.bf16.mxu0 0
    %228 = vmatpush2.bf16.msra.mxu0 0
    %229 = vmatprep.subr.bf16.mxu0 0
    %230 = vmatpush2.bf16.msra.mxu0 0
    %231 = vmatprep.subr.bf16.mxu0 0
    %232 = vmatpush2.bf16.msra.mxu0 0
    %233 = vmatprep.subr.bf16.mxu0 0
    %234 = vmatpush2.bf16.msra.mxu0 0
    %235 = vmatprep.subr.bf16.mxu0 0
    %236 = vmatpush2.bf16.msra.mxu0 0
    %237 = vmatprep.subr.bf16.mxu0 0
    %238 = vmatpush2.bf16.msra.mxu0 0
    %239 = vmatprep.subr.bf16.mxu0 0
    %240 = vmatpush2.bf16.msra.mxu0 0
    %241 = vmatprep.subr.bf16.mxu0 0
    %242 = vmatpush2.bf16.msra.mxu0 0
    %243 = vmatprep.mubr.bf16.mxu0 0
    %244 = vmatmul.mubr.bf16.gmra.mxu0 %v168
    %v245 = vpop.f32.mrf.mxu0
    %v246 = vadd.f32 0.0, %v245
    %v247 = vpop.f32.mrf.mxu0
    %v248 = vadd.f32 0.0, %v247
    %v249 = vpop.f32.mrf.mxu0
    %v250 = vpop.f32.mrf.mxu0
    %251 = vdwg.mxu0
    %256 = vrot.lane.b32.xlu0 %v116, 1
    %v257 = vpop.permute.xlu0 %256
    %258 = vrot.lane.b32.xlu0 %v118, 1
    %v259 = vpop.permute.xlu0 %258
    %260 = vrot.lane.b32.xlu0 %v157, 1
    %v261 = vpop.permute.xlu0 %260
    %262 = vrot.lane.b32.xlu0 %v159, 1
    %v263 = vpop.permute.xlu0 %262
    %vm264 = vcmask 7168
    %v265 = vsel %vm264, %v257, %v259
    %v266 = vsel %vm264, %v259, %v261
    %v267 = vsel %vm264, %v261, %v263
    %v272 = vsel %vm264, 0.0, %v257
    %277 = vrot.lane.b32.xlu0 %v205, 127
    %v278 = vpop.permute.xlu0 %277
    %279 = vrot.lane.b32.xlu0 %v207, 127
    %v280 = vpop.permute.xlu0 %279
    %281 = vrot.lane.b32.xlu0 %v246, 127
    %v282 = vpop.permute.xlu0 %281
    %283 = vrot.lane.b32.xlu0 %v248, 127
    %v284 = vpop.permute.xlu0 %283
    %vm285 = vcmask 1039360
    %v286 = vsel %vm285, %v278, %v280
    %v287 = vsel %vm285, %v280, %v282
    %v288 = vsel %vm285, %v282, %v284
    %v293 = vsel %vm285, %v284, 0.0
    %v294 = vlaneseq
    %v295 = vand.u32 %v294, 127
    %v296 = vadd.s32 %v295, 128
    %v297 = vadd.s32 %v295, 256
    %v298 = vadd.s32 %v295, 384
    %vm299 = vcmp.lt.s32.totalorder %v295, 0
    %v300 = vsub.s32 0, %v295
    %v301 = vsel %vm299, %v300, %v295
    %v302 = vshrl.u32 %v301, 4
    %v303 = vand.u32 %v301, 15
    %v304 = vsub.s32 0, %v303
    %v305 = vsel %vm299, %v304, %v303
    %vm306 = vcmp.lt.s32.totalorder %v296, 0
    %v307 = vsub.s32 0, %v296
    %v308 = vsel %vm306, %v307, %v296
    %v309 = vshrl.u32 %v308, 4
    %v310 = vand.u32 %v308, 15
    %v311 = vsub.s32 0, %v310
    %v312 = vsel %vm306, %v311, %v310
    %vm313 = vcmp.lt.s32.totalorder %v297, 0
    %v314 = vsub.s32 0, %v297
    %v315 = vsel %vm313, %v314, %v297
    %v316 = vshrl.u32 %v315, 4
    %v317 = vand.u32 %v315, 15
    %v318 = vsub.s32 0, %v317
    %v319 = vsel %vm313, %v318, %v317
    %vm320 = vcmp.lt.s32.totalorder %v298, 0
    %v321 = vsub.s32 0, %v298
    %v322 = vsel %vm320, %v321, %v298
    %v323 = vshrl.u32 %v322, 4
    %v324 = vand.u32 %v322, 15
    %v325 = vsub.s32 0, %v324
    %v326 = vsel %vm320, %v325, %v324
    %vm327 = vcmp.ne.s32.totalorder %v305, 0
    %vm328 = vcmp.ne.s32.totalorder %v312, 0
    %vm329 = vcmp.ne.s32.totalorder %v319, 0
    %vm330 = vcmp.ne.s32.totalorder %v326, 0
    %vm331 = vcmp.lt.s32.totalorder %v305, 0
    %vm332 = vcmp.lt.s32.totalorder %v312, 0
    %vm333 = vcmp.lt.s32.totalorder %v319, 0
    %vm334 = vcmp.lt.s32.totalorder %v326, 0
    %vm335 = vmand %vm331, %vm327
    %vm336 = vmand %vm332, %vm328
    %vm337 = vmand %vm333, %vm329
    %vm338 = vmand %vm334, %vm330
    %v339 = vadd.s32 %v305, 16
    %v340 = vadd.s32 %v312, 16
    %v341 = vadd.s32 %v319, 16
    %v342 = vadd.s32 %v326, 16
    %v343 = vsel %vm335, %v339, %v305
    %v344 = vsel %vm336, %v340, %v312
    %v345 = vsel %vm337, %v341, %v319
    %v346 = vsel %vm338, %v342, %v326
    %vm347 = vcmp.ne.s32.totalorder %v343, 0
    %vm348 = vcmp.ne.s32.totalorder %v344, 0
    %vm349 = vcmp.ne.s32.totalorder %v345, 0
    %vm350 = vcmp.ne.s32.totalorder %v346, 0
    %v351 = vsel %vm347, 1, 0
    %v352 = vsel %vm348, 1, 0
    %v353 = vsel %vm349, 1, 0
    %v354 = vsel %vm350, 1, 0
    %vm355 = vcmp.eq.s32.totalorder %v351, 1
    %vm356 = vcmp.eq.s32.totalorder %v352, 1
    %vm357 = vcmp.eq.s32.totalorder %v353, 1
    %vm358 = vcmp.eq.s32.totalorder %v354, 1
    %v359 = vsel %vm355, %v272, 0.0
    %v360 = vsel %vm356, %v265, 0.0
    %v361 = vsel %vm357, %v266, 0.0
    %v362 = vsel %vm358, %v267, 0.0
    %v364 = vsel %vm64, %v164, 0
    %366 = vmatprep.subr.bf16.mxu0 0
    %367 = vmatpush1.bf16.msra.mxu0 0
    %368 = vmatprep.subr.bf16.mxu0 0
    %369 = vmatpush1.bf16.msra.mxu0 0
    %370 = vmatprep.subr.bf16.mxu0 0
    %371 = vmatpush1.bf16.msra.mxu0 0
    %372 = vmatprep.subr.bf16.mxu0 0
    %373 = vmatpush1.bf16.msra.mxu0 0
    %374 = vmatprep.subr.bf16.mxu0 0
    %375 = vmatpush1.bf16.msra.mxu0 0
    %376 = vmatprep.subr.bf16.mxu0 0
    %377 = vmatpush1.bf16.msra.mxu0 0
    %378 = vmatprep.subr.bf16.mxu0 0
    %379 = vmatpush1.bf16.msra.mxu0 0
    %380 = vmatprep.subr.bf16.mxu0 %v73
    %381 = vmatpush1.bf16.msra.mxu0 %v70
    %382 = vmatprep.subr.bf16.mxu0 0
    %383 = vmatpush2.bf16.msra.mxu0 0
    %384 = vmatprep.subr.bf16.mxu0 0
    %385 = vmatpush2.bf16.msra.mxu0 0
    %386 = vmatprep.subr.bf16.mxu0 0
    %387 = vmatpush2.bf16.msra.mxu0 0
    %388 = vmatprep.subr.bf16.mxu0 0
    %389 = vmatpush2.bf16.msra.mxu0 0
    %390 = vmatprep.subr.bf16.mxu0 0
    %391 = vmatpush2.bf16.msra.mxu0 0
    %392 = vmatprep.subr.bf16.mxu0 0
    %393 = vmatpush2.bf16.msra.mxu0 0
    %394 = vmatprep.subr.bf16.mxu0 0
    %395 = vmatpush2.bf16.msra.mxu0 0
    %396 = vmatprep.subr.bf16.mxu0 0
    %397 = vmatpush2.bf16.msra.mxu0 0
    %398 = vmatprep.mubr.bf16.mxu0 0
    %399 = vmatmul.mubr.bf16.gmra.mxu0 %v364
    %v400 = vpop.f32.mrf.mxu0
    %v401 = vadd.f32 %v359, %v400
    %v402 = vpop.f32.mrf.mxu0
    %v403 = vadd.f32 %v360, %v402
    %v404 = vpop.f32.mrf.mxu0
    %v405 = vpop.f32.mrf.mxu0
    %406 = vdwg.mxu0
    %407 = vmatprep.subr.bf16.mxu0 0
    %408 = vmatpush1.bf16.msra.mxu0 0
    %409 = vmatprep.subr.bf16.mxu0 0
    %410 = vmatpush1.bf16.msra.mxu0 0
    %411 = vmatprep.subr.bf16.mxu0 0
    %412 = vmatpush1.bf16.msra.mxu0 0
    %413 = vmatprep.subr.bf16.mxu0 0
    %414 = vmatpush1.bf16.msra.mxu0 0
    %415 = vmatprep.subr.bf16.mxu0 0
    %416 = vmatpush1.bf16.msra.mxu0 0
    %417 = vmatprep.subr.bf16.mxu0 0
    %418 = vmatpush1.bf16.msra.mxu0 0
    %419 = vmatprep.subr.bf16.mxu0 0
    %420 = vmatpush1.bf16.msra.mxu0 0
    %421 = vmatprep.subr.bf16.mxu0 %v79
    %422 = vmatpush1.bf16.msra.mxu0 %v76
    %423 = vmatprep.subr.bf16.mxu0 0
    %424 = vmatpush2.bf16.msra.mxu0 0
    %425 = vmatprep.subr.bf16.mxu0 0
    %426 = vmatpush2.bf16.msra.mxu0 0
    %427 = vmatprep.subr.bf16.mxu0 0
    %428 = vmatpush2.bf16.msra.mxu0 0
    %429 = vmatprep.subr.bf16.mxu0 0
    %430 = vmatpush2.bf16.msra.mxu0 0
    %431 = vmatprep.subr.bf16.mxu0 0
    %432 = vmatpush2.bf16.msra.mxu0 0
    %433 = vmatprep.subr.bf16.mxu0 0
    %434 = vmatpush2.bf16.msra.mxu0 0
    %435 = vmatprep.subr.bf16.mxu0 0
    %436 = vmatpush2.bf16.msra.mxu0 0
    %437 = vmatprep.subr.bf16.mxu0 0
    %438 = vmatpush2.bf16.msra.mxu0 0
    %439 = vmatprep.mubr.bf16.mxu0 0
    %440 = vmatmul.mubr.bf16.gmra.mxu0 %v364
    %v441 = vpop.f32.mrf.mxu0
    %v442 = vadd.f32 %v361, %v441
    %v443 = vpop.f32.mrf.mxu0
    %v444 = vadd.f32 %v362, %v443
    %v445 = vpop.f32.mrf.mxu0
    %v446 = vpop.f32.mrf.mxu0
    %447 = vdwg.mxu0
    %vm448 = vcmp.ne.s32.totalorder %v343, 15
    %vm449 = vcmp.ne.s32.totalorder %v344, 15
    %vm450 = vcmp.ne.s32.totalorder %v345, 15
    %vm451 = vcmp.ne.s32.totalorder %v346, 15
    %v452 = vsel %vm448, 1, 0
    %v453 = vsel %vm449, 1, 0
    %v454 = vsel %vm450, 1, 0
    %v455 = vsel %vm451, 1, 0
    %vm456 = vcmp.eq.s32.totalorder %v452, 1
    %vm457 = vcmp.eq.s32.totalorder %v453, 1
    %vm458 = vcmp.eq.s32.totalorder %v454, 1
    %vm459 = vcmp.eq.s32.totalorder %v455, 1
    %v460 = vsel %vm456, %v286, 0.0
    %v461 = vsel %vm457, %v287, 0.0
    %v462 = vsel %vm458, %v288, 0.0
    %v463 = vsel %vm459, %v293, 0.0
    %v464 = vadd.f32 %v401, %v460
    %v465 = vadd.f32 %v403, %v461
    %v466 = vadd.f32 %v442, %v462
    %v467 = vadd.f32 %v444, %v463
    %v468 = vpack.c.bf16 %v464, %v464
    %v469 = vpack.c.bf16 %v465, %v465
    %v470 = vpack.c.bf16 %v466, %v466
    %v471 = vpack.c.bf16 %v467, %v467
    %v476 = vunpack.c.l.b16 %v468
    %v477 = vunpack.c.l.b16 %v469
    %v478 = vunpack.c.l.b16 %v470
    %v479 = vunpack.c.l.b16 %v471
    %v480 = vpack.c.b16 %v477, %v476
    %v481 = vpack.c.b16 %v479, %v478
    %484 = vst [vmem:[#allocation7] sm:$0xff] %v480
    %485 = vst [vmem:[#allocation7 + $0x8] sm:$0xff] %v481
    %v486 = vadd.f32 %v464, %v465
    %v487 = vadd.f32 %v486, %v466
    %v488 = vadd.f32 %v487, %v467
    %489 = vadd.xlane.f32.xlu0 %v488
    %v490 = vpop.xlane.xlu0 %489
    %v491 = vmul.f32 %v464, %v464
    %v492 = vmul.f32 %v465, %v465
    %v493 = vmul.f32 %v466, %v466
    %v494 = vmul.f32 %v467, %v467
    %v495 = vadd.f32 %v491, %v492
    %v496 = vadd.f32 %v495, %v493
    %v497 = vadd.f32 %v496, %v494
    %498 = vadd.xlane.f32.xlu0 %v497
    %v499 = vpop.xlane.xlu0 %498
    %v500 = vsel %vm264, %v490, %v499
    %vm501 = vcmask 15360
    %502 = vst.msk [vmem:[%s3] sm:$0xff] %vm501, %v500
    // Predicated region
    $region18: #{tpu_custom_call.1} parent=1 // pred_check
      _
    $region19: #{tpu_custom_call.1} parent=1 // pred_check_branch
      %504 = sbr.rel (0) target = $region21
    $region20: #{tpu_custom_call.1} parent=1 // pred_region
      %s506 = ssub.s32 256, 256
      %507 = vsyncadd [#allocation4], %s506
      %s509 = sshll.u32 [#allocation7], 4
      %s510 = int_to_ptr.vmem [resolvable:$true] %s509
      %512 = dma.vmem_to_hbm [thread:$0]  %s510, 256, %s2, [#allocation4]
    $region21: #{tpu_custom_call.1} parent=1 // pred_fallthru
      _
    // Predicated region
    $region22: #{tpu_custom_call.1} parent=1 // pred_check
      _
    $region23: #{tpu_custom_call.1} parent=1 // pred_check_branch
      %514 = sbr.rel (0) target = $region25
    $region24: #{tpu_custom_call.1} parent=1 // pred_region
      _
    $region25: #{tpu_custom_call.1} parent=1 // pred_fallthru
      _
    // Predicated region
    $region26: #{tpu_custom_call.1} parent=1 // pred_check
      _
    $region27: #{tpu_custom_call.1} parent=1 // pred_check_branch
      %516 = sbr.rel (0) target = $region29
    $region28: #{tpu_custom_call.1} parent=1 // pred_region
      %517 = dma.done [#allocation4], 256
    $region29: #{tpu_custom_call.1} parent=1 // pred_fallthru
      _
    // Predicated region
    $region30: #{tpu_custom_call.1} parent=1 // pred_check
      _
    $region31: #{tpu_custom_call.1} parent=1 // pred_check_branch
      %519 = sbr.rel (0) target = $region33
    $region32: #{tpu_custom_call.1} parent=1 // pred_region
      _
    $region33: #{tpu_custom_call.1} parent=1 // pred_fallthru
      _
    %520 = vsyncpa [#allocation3], 1
    %521 = vsyncpa [#allocation6], 1
    %522 = vsyncpa [#allocation4], 1

</llo_original>
